<compile_context>
chip_gen: v5e
topology: v5e:2x2
jax: 0.10.0
libtpu: 0.0.40
codegen_flags: <defaults>
</compile_context>

<pallas_src>
import functools

import jax
import jax.numpy as jnp
from jax.experimental import pallas as pl
from jax.experimental.pallas import tpu as pltpu


def _round_up(x, m):
    return (x + m - 1) // m * m


def _cdiv(a, b):
    return -(-a // b)


def _nbytes(a):
    return int(a.size) * a.dtype.itemsize


# ---------------------------------------------------------------------------
# Kernel
# ---------------------------------------------------------------------------
def _tab_kernel(x_ref, w1_ref, b1_ref, w2_ref, b2_ref, w3_ref, b3_ref, o_ref):
    """Fused TAB forward on one batch tile.

    BN + weight_norm are pre-folded into (W, b).  Three MXU matmuls with bf16
    operands and f32 accumulation; bias add + ReLU stay in f32.
    """
    x = x_ref[...]                      # already bf16 (cast in the wrapper)

    h = jnp.dot(x, w1_ref[...], preferred_element_type=jnp.float32)
    h = jnp.maximum(h + b1_ref[...], 0.0)

    h = jnp.dot(h.astype(jnp.bfloat16), w2_ref[...],
                preferred_element_type=jnp.float32)
    h = jnp.maximum(h + b2_ref[...], 0.0)

    h = jnp.dot(h.astype(jnp.bfloat16), w3_ref[...],
                preferred_element_type=jnp.float32)
    o_ref[...] = (h + b3_ref[...]).astype(o_ref.dtype)


# ---------------------------------------------------------------------------
# Parameter preparation (wrapper-side folding + padding)
# ---------------------------------------------------------------------------
def _bn_fold(gamma, beta, running_mean, running_var, eps=1e-5):
    """BatchNorm1d (eval) -> per-feature scale/shift vectors."""
    inv = gamma / jnp.sqrt(running_var + eps)
    return inv, beta - running_mean * inv


def _weight_norm(v, g):
    """PyTorch weight_norm: W = g * v / ||v||_row.  v:(out,in), g:(out,).
    Returns W^T with shape (in, out)."""
    norm = jnp.sqrt(jnp.sum(v * v, axis=1, keepdims=True))
    return ((g[:, None] / norm) * v).T


def prepare_tab_params(params):
    """Fold BN into the weight-normed Linears, pad hidden/output feature dims
    to lane-dense multiples of 128 (the tiny input dim is only rounded to the
    8-sublane granule), cast weights to bf16.  Returns (kernel_params, out_dim)."""
    (s1, t1, w1, b1, s2, t2, w2, b2, s3, t3, w3, b3) = params

    def fold(s, t, w, b):
        # (x*s + t) @ W + b  ==  x @ (s[:,None]*W) + (t@W + b)
        return s[:, None] * w, t @ w + b

    w1f, b1f = fold(s1, t1, w1, b1)
    w2f, b2f = fold(s2, t2, w2, b2)
    w3f, b3f = fold(s3, t3, w3, b3)

    in_dim, hid = w1f.shape
    out_dim = w3f.shape[1]
    in_p = _round_up(in_dim, 8)        # no 128-pad of K: MXU underfills anyway
    hid_p = _round_up(hid, 128)
    out_p = _round_up(out_dim, 128)    # lane-dense output stores

    def pad_w(w, r, c):
        return jnp.pad(w, ((0, r - w.shape[0]), (0, c - w.shape[1])))

    def pad_b(b, c):
        return jnp.pad(b, (0, c - b.shape[0]))[None, :]

    kernel_params = (
        pad_w(w1f, in_p, hid_p).astype(jnp.bfloat16),  pad_b(b1f, hid_p),
        pad_w(w2f, hid_p, hid_p).astype(jnp.bfloat16), pad_b(b2f, hid_p),
        pad_w(w3f, hid_p, out_p).astype(jnp.bfloat16), pad_b(b3f, out_p),
    )
    return kernel_params, out_dim


# ---------------------------------------------------------------------------
# Tiling policy
# ---------------------------------------------------------------------------
_TB_CAP = 2048   # rows per batch tile; 2 buffers of (x bf16 + out f32) << VMEM


def _choose_tiling(batch):
    """Pick (batch tile rows, number of grid steps).

    One big tile when the batch is tiny; otherwise the smallest EVEN number of
    steps that keeps tiles <= _TB_CAP rows, so both v7x TensorCores get a
    balanced shard via dimension_semantics=("parallel",) while v5e/v6e only pay
    one extra ~0.35 us pipeline step.
    """
    batch8 = _round_up(batch, 8)
    if batch8 <= 8:
        n_steps = 1
    else:
        n_steps = max(2, _cdiv(batch8, _TB_CAP))
        n_steps += n_steps % 2                    # even grid length for v7x
    tb = _round_up(_cdiv(batch8, n_steps), 8)
    return tb, n_steps


# ---------------------------------------------------------------------------
# Forward
# ---------------------------------------------------------------------------
@functools.partial(jax.jit, static_argnames=("out_dim",))
def tab_forward(x, kernel_params, *, out_dim):
    w1, b1, w2, b2, w3, b3 = kernel_params
    batch, in_dim = x.shape
    in_p, hid_p = w1.shape
    out_p = w3.shape[1]

    tb, n_steps = _choose_tiling(batch)
    batch_p = tb * n_steps

    if batch_p != batch or in_p != in_dim:
        x = jnp.pad(x, ((0, batch_p - batch), (0, in_p - in_dim)))
    x_p = x.astype(jnp.bfloat16)          # bf16 on the wire: half the x DMA

    # Computed VMEM budget: 2x-buffered streamed tiles + resident weights/bias,
    # with 2x headroom (stays a few MiB -- far under v7x's 64 MiB physical).
    resident = sum(_nbytes(a) for a in (w1, b1, w2, b2, w3, b3))
    streamed = tb * in_p * 2 + tb * out_p * 4      # bf16 x tile + f32 out tile
    vmem_limit = min(max(2 * (2 * resident + 2 * streamed), 8 << 20), 48 << 20)

    const = lambda i: (0, 0)   # weights/biases: resident across grid steps
    tile = lambda i: (i, 0)    # batch-tiled x / out

    out = pl.pallas_call(
        _tab_kernel,
        out_shape=jax.ShapeDtypeStruct((batch_p, out_p), jnp.float32),
        grid=(n_steps,),
        in_specs=[
            pl.BlockSpec((tb, in_p), tile),
            pl.BlockSpec((in_p, hid_p), const),
            pl.BlockSpec((1, hid_p), const),
            pl.BlockSpec((hid_p, hid_p), const),
            pl.BlockSpec((1, hid_p), const),
            pl.BlockSpec((hid_p, out_p), const),
            pl.BlockSpec((1, out_p), const),
        ],
        out_specs=pl.BlockSpec((tb, out_p), tile),
        compiler_params=pltpu.CompilerParams(
            dimension_semantics=("parallel",),
            vmem_limit_bytes=int(vmem_limit),
        ),
    )(x_p, w1, b1, w2, b2, w3, b3)

    return out[:batch, :out_dim]


# ---------------------------------------------------------------------------
# Synthetic init + references
# ---------------------------------------------------------------------------
def init_tab_params(key, input_dim, out_dim, layer_dim):
    """Deterministic parameter init mirroring the PyTorch module shapes."""
    keys = jax.random.split(key, 6)

    def linear_init(kw, kb, fan_in, fan_out):
        bound = 1.0 / jnp.sqrt(fan_in)
        v = jax.random.uniform(kw, (fan_out, fan_in), jnp.float32, -bound, bound)
        b = jax.random.uniform(kb, (fan_out,), jnp.float32, -bound, bound)
        g = jnp.sqrt(jnp.sum(v * v, axis=1))      # weight_norm init: g = ||v||
        return _weight_norm(v, g), b              # (in, out), (out,)

    def bn(dim):  # gamma=1, beta=0, running_mean=0, running_var=1
        return _bn_fold(jnp.ones((dim,), jnp.float32), jnp.zeros((dim,), jnp.float32),
                        jnp.zeros((dim,), jnp.float32), jnp.ones((dim,), jnp.float32))

    s1, t1 = bn(input_dim)
    w1, b1 = linear_init(keys[0], keys[1], input_dim, layer_dim)
    s2, t2 = bn(layer_dim)
    w2, b2 = linear_init(keys[2], keys[3], layer_dim, layer_dim)
    s3, t3 = bn(layer_dim)
    w3, b3 = linear_init(keys[4], keys[5], layer_dim, out_dim)

    return (s1, t1, w1, b1, s2, t2, w2, b2, s3, t3, w3, b3)


def tab_reference_f32(x, params):
    """Full-precision pure-JAX reference of the eval-mode module."""
    (s1, t1, w1, b1, s2, t2, w2, b2, s3, t3, w3, b3) = params
    h = x * s1 + t1
    h = jnp.maximum(h @ w1 + b1, 0.0)
    h = h * s2 + t2
    h = jnp.maximum(h @ w2 + b2, 0.0)
    h = h * s3 + t3
    return h @ w3 + b3


def tab_reference_bf16(x, kernel_params, out_dim):
    """Reference matching the kernel's bf16-operand / f32-accumulate path."""
    w1, b1, w2, b2, w3, b3 = kernel_params
    in_p = w1.shape[0]
    xp = jnp.pad(x, ((0, 0), (0, in_p - x.shape[1]))).astype(jnp.bfloat16)
    h = jnp.dot(xp, w1, preferred_element_type=jnp.float32) + b1
    h = jnp.maximum(h, 0.0)
    h = jnp.dot(h.astype(jnp.bfloat16), w2, preferred_element_type=jnp.float32) + b2
    h = jnp.maximum(h, 0.0)
    h = jnp.dot(h.astype(jnp.bfloat16), w3, preferred_element_type=jnp.float32) + b3
    return h[:, :out_dim]


if __name__ == "__main__":
    input_dim, out_dim, layer_dim = 32, 16, 64
    batch = 256   # -> 2 grid steps of 128 rows (one per v7x TensorCore)

    key = jax.random.PRNGKey(0)
    kx, kp = jax.random.split(key)
    x = jax.random.normal(kx, (batch, input_dim), jnp.float32)

    params = init_tab_params(kp, input_dim, out_dim, layer_dim)
    kernel_params, out_dim_ = prepare_tab_params(params)

    out = tab_forward(x, kernel_params, out_dim=out_dim_)
    jax.block_until_ready(out)
    assert out.shape == (batch, out_dim)

    # Exact-path check (same bf16 operand casts, f32 accumulation).
    ref_bf16 = tab_reference_bf16(x, kernel_params, out_dim_)
    assert jnp.allclose(out, ref_bf16, atol=1e-4, rtol=1e-4)

    # Sanity check against the full-precision module semantics.
    ref_f32 = tab_reference_f32(x, params)
    assert jnp.allclose(out, ref_f32, atol=5e-2, rtol=5e-2)

    print("KERNEL_OK")
</pallas_src>

<mosaic_0001>
module attributes {stable_mosaic.version = 11 : i64} {
  func.func @_tab_kernel(%arg0: i32, %arg1: memref<128x32xbf16, #tpu.memory_space<vmem>>, %arg2: memref<32x128xbf16, #tpu.memory_space<vmem>>, %arg3: memref<1x128xf32, #tpu.memory_space<vmem>>, %arg4: memref<128x128xbf16, #tpu.memory_space<vmem>>, %arg5: memref<1x128xf32, #tpu.memory_space<vmem>>, %arg6: memref<128x128xbf16, #tpu.memory_space<vmem>>, %arg7: memref<1x128xf32, #tpu.memory_space<vmem>>, %arg8: memref<128x128xf32, #tpu.memory_space<vmem>>) attributes {dimension_semantics = [#tpu.dimension_semantics<parallel>], iteration_bounds = array<i64: 2>, scalar_prefetch = 0 : i64, scratch_operands = 0 : i64, tpu.core_type = #tpu.core_type<tc>, window_params = [{transform_indices = @transform_0, window_bounds = array<i64: 128, 32>}, {pipeline_mode = #tpu.pipeline_mode<synchronous>, transform_indices = @transform_1, window_bounds = array<i64: 32, 128>}, {pipeline_mode = #tpu.pipeline_mode<synchronous>, transform_indices = @transform_2, window_bounds = array<i64: 1, 128>}, {pipeline_mode = #tpu.pipeline_mode<synchronous>, transform_indices = @transform_3, window_bounds = array<i64: 128, 128>}, {pipeline_mode = #tpu.pipeline_mode<synchronous>, transform_indices = @transform_4, window_bounds = array<i64: 1, 128>}, {pipeline_mode = #tpu.pipeline_mode<synchronous>, transform_indices = @transform_5, window_bounds = array<i64: 128, 128>}, {pipeline_mode = #tpu.pipeline_mode<synchronous>, transform_indices = @transform_6, window_bounds = array<i64: 1, 128>}, {transform_indices = @transform_7, window_bounds = array<i64: 128, 128>}]} {
    %c0 = arith.constant 0 : index
    %c0_0 = arith.constant 0 : index
    %0 = vector.load %arg1[%c0, %c0_0] : memref<128x32xbf16, #tpu.memory_space<vmem>>, vector<128x32xbf16>
    %c0_1 = arith.constant 0 : index
    %c0_2 = arith.constant 0 : index
    %1 = vector.load %arg2[%c0_1, %c0_2] : memref<32x128xbf16, #tpu.memory_space<vmem>>, vector<32x128xbf16>
    %cst = arith.constant dense<0.000000e+00> : vector<128x128xf32>
    %2 = tpu.matmul %0, %1, %cst {dimension_numbers = #tpu.dot_dimension_numbers<[1], [0], [0], [1], [0, 0, 1, 1], [], []>} : vector<128x32xbf16>, vector<32x128xbf16>, vector<128x128xf32> -> vector<128x128xf32>
    %c0_3 = arith.constant 0 : index
    %c0_4 = arith.constant 0 : index
    %3 = vector.load %arg3[%c0_3, %c0_4] : memref<1x128xf32, #tpu.memory_space<vmem>>, vector<1x128xf32>
    %4 = vector.broadcast %3 : vector<1x128xf32> to vector<128x128xf32>
    %5 = arith.addf %2, %4 : vector<128x128xf32>
    %cst_5 = arith.constant 0.000000e+00 : f32
    %6 = vector.broadcast %cst_5 : f32 to vector<128x128xf32>
    %7 = arith.maximumf %5, %6 : vector<128x128xf32>
    %8 = arith.truncf %7 : vector<128x128xf32> to vector<128x128xbf16>
    %c0_6 = arith.constant 0 : index
    %c0_7 = arith.constant 0 : index
    %9 = vector.load %arg4[%c0_6, %c0_7] : memref<128x128xbf16, #tpu.memory_space<vmem>>, vector<128x128xbf16>
    %cst_8 = arith.constant dense<0.000000e+00> : vector<128x128xf32>
    %10 = tpu.matmul %8, %9, %cst_8 {dimension_numbers = #tpu.dot_dimension_numbers<[1], [0], [0], [1], [0, 0, 1, 1], [], []>} : vector<128x128xbf16>, vector<128x128xbf16>, vector<128x128xf32> -> vector<128x128xf32>
    %c0_9 = arith.constant 0 : index
    %c0_10 = arith.constant 0 : index
    %11 = vector.load %arg5[%c0_9, %c0_10] : memref<1x128xf32, #tpu.memory_space<vmem>>, vector<1x128xf32>
    %12 = vector.broadcast %11 : vector<1x128xf32> to vector<128x128xf32>
    %13 = arith.addf %10, %12 : vector<128x128xf32>
    %cst_11 = arith.constant 0.000000e+00 : f32
    %14 = vector.broadcast %cst_11 : f32 to vector<128x128xf32>
    %15 = arith.maximumf %13, %14 : vector<128x128xf32>
    %16 = arith.truncf %15 : vector<128x128xf32> to vector<128x128xbf16>
    %c0_12 = arith.constant 0 : index
    %c0_13 = arith.constant 0 : index
    %17 = vector.load %arg6[%c0_12, %c0_13] : memref<128x128xbf16, #tpu.memory_space<vmem>>, vector<128x128xbf16>
    %cst_14 = arith.constant dense<0.000000e+00> : vector<128x128xf32>
    %18 = tpu.matmul %16, %17, %cst_14 {dimension_numbers = #tpu.dot_dimension_numbers<[1], [0], [0], [1], [0, 0, 1, 1], [], []>} : vector<128x128xbf16>, vector<128x128xbf16>, vector<128x128xf32> -> vector<128x128xf32>
    %c0_15 = arith.constant 0 : index
    %c0_16 = arith.constant 0 : index
    %19 = vector.load %arg7[%c0_15, %c0_16] : memref<1x128xf32, #tpu.memory_space<vmem>>, vector<1x128xf32>
    %20 = vector.broadcast %19 : vector<1x128xf32> to vector<128x128xf32>
    %21 = arith.addf %18, %20 : vector<128x128xf32>
    %c0_17 = arith.constant 0 : index
    %c0_18 = arith.constant 0 : index
    %22 = vector.load %arg8[%c0_17, %c0_18] : memref<128x128xf32, #tpu.memory_space<vmem>>, vector<128x128xf32>
    tpu.vector_store %arg8[%c0_17, %c0_18], %21 {strides = array<i32>} : memref<128x128xf32, #tpu.memory_space<vmem>>, vector<128x128xf32>,
    return
  }
  func.func @transform_0(%arg0: i32) -> (i32, i32) {
    %c0_i32 = arith.constant 0 : i32
    %c0_i32_0 = arith.constant 0 : i32
    return %arg0, %c0_i32 : i32, i32
  }
  func.func @transform_1(%arg0: i32) -> (i32, i32) {
    %c0_i32 = arith.constant 0 : i32
    %c0_i32_0 = arith.constant 0 : i32
    %c0_i32_1 = arith.constant 0 : i32
    return %c0_i32, %c0_i32_0 : i32, i32
  }
  func.func @transform_2(%arg0: i32) -> (i32, i32) {
    %c0_i32 = arith.constant 0 : i32
    %c0_i32_0 = arith.constant 0 : i32
    %c0_i32_1 = arith.constant 0 : i32
    return %c0_i32, %c0_i32_0 : i32, i32
  }
  func.func @transform_3(%arg0: i32) -> (i32, i32) {
    %c0_i32 = arith.constant 0 : i32
    %c0_i32_0 = arith.constant 0 : i32
    %c0_i32_1 = arith.constant 0 : i32
    return %c0_i32, %c0_i32_0 : i32, i32
  }
  func.func @transform_4(%arg0: i32) -> (i32, i32) {
    %c0_i32 = arith.constant 0 : i32
    %c0_i32_0 = arith.constant 0 : i32
    %c0_i32_1 = arith.constant 0 : i32
    return %c0_i32, %c0_i32_0 : i32, i32
  }
  func.func @transform_5(%arg0: i32) -> (i32, i32) {
    %c0_i32 = arith.constant 0 : i32
    %c0_i32_0 = arith.constant 0 : i32
    %c0_i32_1 = arith.constant 0 : i32
    return %c0_i32, %c0_i32_0 : i32, i32
  }
  func.func @transform_6(%arg0: i32) -> (i32, i32) {
    %c0_i32 = arith.constant 0 : i32
    %c0_i32_0 = arith.constant 0 : i32
    %c0_i32_1 = arith.constant 0 : i32
    return %c0_i32, %c0_i32_0 : i32, i32
  }
  func.func @transform_7(%arg0: i32) -> (i32, i32) {
    %c0_i32 = arith.constant 0 : i32
    %c0_i32_0 = arith.constant 0 : i32
    return %arg0, %c0_i32 : i32, i32
  }
}

</mosaic_0001>

<llo_original>
// kernel: tab_forward.1
$region0: #{tab_forward.1}
  #allocation0 [shape = 'u32[]', space=smem, size = 0x4, offset = 0x4, fixed_abs, tag = 'smem constant byte address 0x4 - core index']
  #allocation1 [shape = 'u32[72,128]{1,0:T(1,128)}', space=vmem, size = 0x9000, scoped, tag = 'internal scratch']
  %s0 = inlined_call_operand.vmem [shape: bf16[256,32], index: 0, kind: input, shape index: {}]
  %s1 = inlined_call_operand.vmem [shape: bf16[32,128], index: 1, kind: input, shape index: {}]
  %s2 = inlined_call_operand.vmem [shape: f32[1,128], index: 2, kind: input, shape index: {}]
  %s3 = inlined_call_operand.vmem [shape: bf16[128,128], index: 3, kind: input, shape index: {}]
  %s4 = inlined_call_operand.vmem [shape: f32[1,128], index: 4, kind: input, shape index: {}]
  %s5 = inlined_call_operand.vmem [shape: bf16[128,128], index: 5, kind: input, shape index: {}]
  %s6 = inlined_call_operand.vmem [shape: f32[1,128], index: 6, kind: input, shape index: {}]
  %s7 = inlined_call_operand.vmem [shape: f32[256,128], index: 7, kind: output, shape index: {}]
  %s8 = sld [smem:[#allocation0]]
  $region61: #{tab_forward.1} parent=0
    _
  %s10 = ssub.s32 1, %s8
  %s11 = scalar_select 0, %s10, %s8
  loop: start=0, step=1, limit=4
  $region2: #{tab_forward.1} parent=0 // loop_pre_header
    _
  $region3: #{tab_forward.1} parent=0 // loop_header
    %s13 = sphi 0, %s17
    %p14 = scmp.ge.s32.totalorder %s13, 4
    %s23 = sphi 0, %s25
    %s26 = sphi 0, %s23
    %s27 = sphi 0, %s26
    %s43 = sphi 0, %s27
    %s47 = sphi 0, %s47
    %s49 = sphi 0, %s47
    %s50 = sphi 0, %s49
    %s64 = sphi 0, %s50
    %s68 = sphi 0, %s68
    %s70 = sphi 0, %s68
    %s71 = sphi 0, %s70
    %s85 = sphi 0, %s71
    %s89 = sphi 0, %s89
    %s91 = sphi 0, %s89
    %s92 = sphi 0, %s91
    %s106 = sphi 0, %s92
    %s110 = sphi 0, %s110
    %s112 = sphi 0, %s110
    %s113 = sphi 0, %s112
    %s127 = sphi 0, %s113
    %s131 = sphi 0, %s131
    %s133 = sphi 0, %s131
    %s134 = sphi 0, %s133
    %s148 = sphi 0, %s134
    %s152 = sphi 0, %s152
    %s154 = sphi 0, %s152
    %s155 = sphi 0, %s154
    %s169 = sphi 0, %s155
    %s175 = sphi 0, %s177
    %s178 = sphi 0, %s175
    %s179 = sphi 0, %s178
    %s195 = sphi 0, %s179
  $region4: #{tab_forward.1} parent=0 // loop_header_branch
    %16 = sbr.rel (%p14) target = $region8
  $region5: #{tab_forward.1} parent=0 // loop_body
    %s18 = ssub.s32 %s13, 1
    %s19 = ssub.s32 %s13, 2
    %s20 = sadd.s32 %s13, 1
    %s21 = ssub.s32 %s13, %s20
    %p22 = scmp.eq.s32.totalorder %s21, 0
    %s24 = sadd.s32 %s23, 1
    %s25 = scalar_select %p22, %s23, %s24
    %p28 = pneg %p22
    %p29 = scmp.eq.s32.totalorder %s13, 1
    %p30 = por %p28, %p29
    %p31 = scmp.ne.s32.totalorder %s23, %s26
    %p32 = scmp.eq.s32.totalorder %s13, 0
    %p33 = por %p31, %p32
    %p34 = scmp.ne.s32.totalorder %s23, %s26
    %p35 = scmp.eq.s32.totalorder %s18, 1
    %p36 = por %p34, %p35
    %p37 = scmp.ne.s32.totalorder %s26, %s27
    %p38 = scmp.eq.s32.totalorder %s18, 0
    %p39 = por %p37, %p38
    %p40 = scmp.ne.s32.totalorder %s26, %s27
    %p41 = scmp.eq.s32.totalorder %s19, 1
    %p42 = por %p40, %p41
    %p44 = scmp.ne.s32.totalorder %s27, %s43
    %p45 = scmp.eq.s32.totalorder %s19, 0
    %p46 = por %p44, %p45
    %s48 = sadd.s32 %s47, 1
    %p51 = scmp.eq.s32.totalorder %s13, 1
    %p52 = scmp.ne.s32.totalorder %s47, %s49
    %p53 = scmp.eq.s32.totalorder %s13, 0
    %p54 = por %p52, %p53
    %p55 = scmp.ne.s32.totalorder %s47, %s49
    %p56 = scmp.eq.s32.totalorder %s18, 1
    %p57 = por %p55, %p56
    %p58 = scmp.ne.s32.totalorder %s49, %s50
    %p59 = scmp.eq.s32.totalorder %s18, 0
    %p60 = por %p58, %p59
    %p61 = scmp.ne.s32.totalorder %s49, %s50
    %p62 = scmp.eq.s32.totalorder %s19, 1
    %p63 = por %p61, %p62
    %p65 = scmp.ne.s32.totalorder %s50, %s64
    %p66 = scmp.eq.s32.totalorder %s19, 0
    %p67 = por %p65, %p66
    %s69 = sadd.s32 %s68, 1
    %p72 = scmp.eq.s32.totalorder %s13, 1
    %p73 = scmp.ne.s32.totalorder %s68, %s70
    %p74 = scmp.eq.s32.totalorder %s13, 0
    %p75 = por %p73, %p74
    %p76 = scmp.ne.s32.totalorder %s68, %s70
    %p77 = scmp.eq.s32.totalorder %s18, 1
    %p78 = por %p76, %p77
    %p79 = scmp.ne.s32.totalorder %s70, %s71
    %p80 = scmp.eq.s32.totalorder %s18, 0
    %p81 = por %p79, %p80
    %p82 = scmp.ne.s32.totalorder %s70, %s71
    %p83 = scmp.eq.s32.totalorder %s19, 1
    %p84 = por %p82, %p83
    %p86 = scmp.ne.s32.totalorder %s71, %s85
    %p87 = scmp.eq.s32.totalorder %s19, 0
    %p88 = por %p86, %p87
    %s90 = sadd.s32 %s89, 1
    %p93 = scmp.eq.s32.totalorder %s13, 1
    %p94 = scmp.ne.s32.totalorder %s89, %s91
    %p95 = scmp.eq.s32.totalorder %s13, 0
    %p96 = por %p94, %p95
    %p97 = scmp.ne.s32.totalorder %s89, %s91
    %p98 = scmp.eq.s32.totalorder %s18, 1
    %p99 = por %p97, %p98
    %p100 = scmp.ne.s32.totalorder %s91, %s92
    %p101 = scmp.eq.s32.totalorder %s18, 0
    %p102 = por %p100, %p101
    %p103 = scmp.ne.s32.totalorder %s91, %s92
    %p104 = scmp.eq.s32.totalorder %s19, 1
    %p105 = por %p103, %p104
    %p107 = scmp.ne.s32.totalorder %s92, %s106
    %p108 = scmp.eq.s32.totalorder %s19, 0
    %p109 = por %p107, %p108
    %s111 = sadd.s32 %s110, 1
    %p114 = scmp.eq.s32.totalorder %s13, 1
    %p115 = scmp.ne.s32.totalorder %s110, %s112
    %p116 = scmp.eq.s32.totalorder %s13, 0
    %p117 = por %p115, %p116
    %p118 = scmp.ne.s32.totalorder %s110, %s112
    %p119 = scmp.eq.s32.totalorder %s18, 1
    %p120 = por %p118, %p119
    %p121 = scmp.ne.s32.totalorder %s112, %s113
    %p122 = scmp.eq.s32.totalorder %s18, 0
    %p123 = por %p121, %p122
    %p124 = scmp.ne.s32.totalorder %s112, %s113
    %p125 = scmp.eq.s32.totalorder %s19, 1
    %p126 = por %p124, %p125
    %p128 = scmp.ne.s32.totalorder %s113, %s127
    %p129 = scmp.eq.s32.totalorder %s19, 0
    %p130 = por %p128, %p129
    %s132 = sadd.s32 %s131, 1
    %p135 = scmp.eq.s32.totalorder %s13, 1
    %p136 = scmp.ne.s32.totalorder %s131, %s133
    %p137 = scmp.eq.s32.totalorder %s13, 0
    %p138 = por %p136, %p137
    %p139 = scmp.ne.s32.totalorder %s131, %s133
    %p140 = scmp.eq.s32.totalorder %s18, 1
    %p141 = por %p139, %p140
    %p142 = scmp.ne.s32.totalorder %s133, %s134
    %p143 = scmp.eq.s32.totalorder %s18, 0
    %p144 = por %p142, %p143
    %p145 = scmp.ne.s32.totalorder %s133, %s134
    %p146 = scmp.eq.s32.totalorder %s19, 1
    %p147 = por %p145, %p146
    %p149 = scmp.ne.s32.totalorder %s134, %s148
    %p150 = scmp.eq.s32.totalorder %s19, 0
    %p151 = por %p149, %p150
    %s153 = sadd.s32 %s152, 1
    %p156 = scmp.eq.s32.totalorder %s13, 1
    %p157 = scmp.ne.s32.totalorder %s152, %s154
    %p158 = scmp.eq.s32.totalorder %s13, 0
    %p159 = por %p157, %p158
    %p160 = scmp.ne.s32.totalorder %s152, %s154
    %p161 = scmp.eq.s32.totalorder %s18, 1
    %p162 = por %p160, %p161
    %p163 = scmp.ne.s32.totalorder %s154, %s155
    %p164 = scmp.eq.s32.totalorder %s18, 0
    %p165 = por %p163, %p164
    %p166 = scmp.ne.s32.totalorder %s154, %s155
    %p167 = scmp.eq.s32.totalorder %s19, 1
    %p168 = por %p166, %p167
    %p170 = scmp.ne.s32.totalorder %s155, %s169
    %p171 = scmp.eq.s32.totalorder %s19, 0
    %p172 = por %p170, %p171
    %s173 = ssub.s32 %s13, %s20
    %p174 = scmp.eq.s32.totalorder %s173, 0
    %s176 = sadd.s32 %s175, 1
    %s177 = scalar_select %p174, %s175, %s176
    %p180 = pneg %p174
    %p181 = scmp.eq.s32.totalorder %s13, 1
    %p182 = por %p180, %p181
    %p183 = scmp.ne.s32.totalorder %s175, %s178
    %p184 = scmp.eq.s32.totalorder %s13, 0
    %p185 = por %p183, %p184
    %p186 = scmp.ne.s32.totalorder %s175, %s178
    %p187 = scmp.eq.s32.totalorder %s18, 1
    %p188 = por %p186, %p187
    %p189 = scmp.ne.s32.totalorder %s178, %s179
    %p190 = scmp.eq.s32.totalorder %s18, 0
    %p191 = por %p189, %p190
    %p192 = scmp.ne.s32.totalorder %s178, %s179
    %p193 = scmp.eq.s32.totalorder %s19, 1
    %p194 = por %p192, %p193
    %p196 = scmp.ne.s32.totalorder %s179, %s195
    %p197 = scmp.eq.s32.totalorder %s19, 0
    %p198 = por %p196, %p197
    %p199 = scmp.le.s32.totalorder 1, %s13
    %p200 = scmp.lt.s32.totalorder %s13, 3
    %p201 = pnand %p199, %p200
    %p202 = pneg %p201
    // Predicated region
    $region9: #{tab_forward.1} parent=5 // pred_check
      _
    $region10: #{tab_forward.1} parent=5 // pred_check_branch
      %204 = sbr.rel (%p201) target = $region12
    $region11: #{tab_forward.1} parent=5 // pred_region
      %s205 = ssub.s32 %s13, 1
      // Predicated region
      $region13: #{tab_forward.1} parent=11 // pred_check
        %p206 = pneg %p60
      $region14: #{tab_forward.1} parent=11 // pred_check_branch
        %208 = sbr.rel (%p206) target = $region16
      $region15: #{tab_forward.1} parent=11 // pred_region
        _
      $region16: #{tab_forward.1} parent=11 // pred_fallthru
        _
      // Predicated region
      $region17: #{tab_forward.1} parent=11 // pred_check
        %p209 = pneg %p81
      $region18: #{tab_forward.1} parent=11 // pred_check_branch
        %211 = sbr.rel (%p209) target = $region20
      $region19: #{tab_forward.1} parent=11 // pred_region
        _
      $region20: #{tab_forward.1} parent=11 // pred_fallthru
        _
      // Predicated region
      $region21: #{tab_forward.1} parent=11 // pred_check
        %p212 = pneg %p102
      $region22: #{tab_forward.1} parent=11 // pred_check_branch
        %214 = sbr.rel (%p212) target = $region24
      $region23: #{tab_forward.1} parent=11 // pred_region
        _
      $region24: #{tab_forward.1} parent=11 // pred_fallthru
        _
      // Predicated region
      $region25: #{tab_forward.1} parent=11 // pred_check
        %p215 = pneg %p123
      $region26: #{tab_forward.1} parent=11 // pred_check_branch
        %217 = sbr.rel (%p215) target = $region28
      $region27: #{tab_forward.1} parent=11 // pred_region
        _
      $region28: #{tab_forward.1} parent=11 // pred_fallthru
        _
      // Predicated region
      $region29: #{tab_forward.1} parent=11 // pred_check
        %p218 = pneg %p144
      $region30: #{tab_forward.1} parent=11 // pred_check_branch
        %220 = sbr.rel (%p218) target = $region32
      $region31: #{tab_forward.1} parent=11 // pred_region
        _
      $region32: #{tab_forward.1} parent=11 // pred_fallthru
        _
      // Predicated region
      $region33: #{tab_forward.1} parent=11 // pred_check
        %p221 = pneg %p165
      $region34: #{tab_forward.1} parent=11 // pred_check_branch
        %223 = sbr.rel (%p221) target = $region36
      $region35: #{tab_forward.1} parent=11 // pred_region
        _
      $region36: #{tab_forward.1} parent=11 // pred_fallthru
        _
    $region12: #{tab_forward.1} parent=5 // pred_fallthru
      _
    %p224 = scmp.lt.s32.totalorder %s13, 2
    // Predicated region
    $region37: #{tab_forward.1} parent=5 // pred_check
      %p225 = pneg %p224
    $region38: #{tab_forward.1} parent=5 // pred_check_branch
      %227 = sbr.rel (%p225) target = $region40
    $region39: #{tab_forward.1} parent=5 // pred_region
      // Predicated region
      $region41: #{tab_forward.1} parent=39 // pred_check
        %p228 = pneg %p33
      $region42: #{tab_forward.1} parent=39 // pred_check_branch
        %230 = sbr.rel (%p228) target = $region44
      $region43: #{tab_forward.1} parent=39 // pred_region
        %s231 = smul.u32 16, %s13
        %p232 = scmp.lt.s32.totalorder %s231, 31
        %s233 = scalar_select %p232, %s231, 31
        %s234 = smul.addr %s233, 4
        %s235 = scalar_lea.vmem %s0, %s234
        %s236 = smul.u32 16, %s13
      $region44: #{tab_forward.1} parent=39 // pred_fallthru
        _
    $region40: #{tab_forward.1} parent=5 // pred_fallthru
      _
    %p237 = scmp.le.s32.totalorder 1, %s13
    %p238 = scmp.lt.s32.totalorder %s13, 3
    %p239 = pnand %p237, %p238
    %p240 = pneg %p239
    // Predicated region
    $region45: #{tab_forward.1} parent=5 // pred_check
      _
    $region46: #{tab_forward.1} parent=5 // pred_check_branch
      %242 = sbr.rel (%p239) target = $region48
    $region47: #{tab_forward.1} parent=5 // pred_region
      %s243 = ssub.s32 %s13, 1
      %s244 = smul.u32 16, %s18
      %p245 = scmp.lt.s32.totalorder %s244, 31
      %s246 = scalar_select %p245, %s244, 31
      %s247 = smul.addr %s246, 4
      %s248 = scalar_lea.vmem %s0, %s247
      %p249 = pneg %p39
      %p250 = pneg %p36
      %p251 = pneg %p60
      %p252 = pneg %p57
      %p253 = pneg %p81
      %p254 = pneg %p78
      %p255 = pneg %p102
      %p256 = pneg %p99
      %p257 = pneg %p123
      %p258 = pneg %p120
      %p259 = pneg %p144
      %p260 = pneg %p141
      %p261 = pneg %p165
      %p262 = pneg %p162
      %p263 = pneg %p191
      %p264 = pneg %p188
      %s265 = smul.u32 16, %s18
      %p266 = scmp.lt.s32.totalorder %s265, 31
      %s267 = scalar_select %p266, %s265, 31
      %s268 = smul.addr %s267, 8
      %s269 = scalar_lea.vmem %s7, %s268
      %s270 = smul.u32 16, %s18
      %p271 = scmp.lt.s32.totalorder %s270, 31
      %s272 = scalar_select %p271, %s270, 31
      %s273 = smul.addr %s272, 4
      %s274 = scalar_lea.vmem %s0, %s273
      %s275 = smul.u32 16, %s18
      %s276 = smul.u32 16, %s18
      %p277 = scmp.lt.s32.totalorder %s276, 31
      %s278 = scalar_select %p277, %s276, 31
      %s279 = smul.addr %s278, 8
      %s280 = scalar_lea.vmem %s7, %s279
      %s281 = smul.u32 16, %s18
      %v283 = vld [vmem:[%s274] sm:$0xf]
      %v284 = vld [vmem:[%s274 + $0x4] sm:$0xf]
      %v285 = vld [vmem:[%s274 + $0x8] sm:$0xf]
      %v286 = vld [vmem:[%s274 + $0xc] sm:$0xf]
      %v287 = vld [vmem:[%s274 + $0x10] sm:$0xf]
      %v288 = vld [vmem:[%s274 + $0x14] sm:$0xf]
      %v289 = vld [vmem:[%s274 + $0x18] sm:$0xf]
      %v290 = vld [vmem:[%s274 + $0x1c] sm:$0xf]
      %v291 = vld [vmem:[%s274 + $0x20] sm:$0xf]
      %v292 = vld [vmem:[%s274 + $0x24] sm:$0xf]
      %v293 = vld [vmem:[%s274 + $0x28] sm:$0xf]
      %v294 = vld [vmem:[%s274 + $0x2c] sm:$0xf]
      %v295 = vld [vmem:[%s274 + $0x30] sm:$0xf]
      %v296 = vld [vmem:[%s274 + $0x34] sm:$0xf]
      %v297 = vld [vmem:[%s274 + $0x38] sm:$0xf]
      %v298 = vld [vmem:[%s274 + $0x3c] sm:$0xf]
      %v299 = vld [vmem:[%s1] sm:$0xf]
      %v300 = vld [vmem:[%s1 + $0x4] sm:$0xf]
      %v301 = vld [vmem:[%s1 + $0x8] sm:$0xf]
      %v302 = vld [vmem:[%s1 + $0xc] sm:$0xf]
      %v303 = vld [vmem:[%s2] sm:$0x1]
      %v305 = vperm.slane %v303, 0
      %v323 = vunpack.c.l.b16 %v283
      %v324 = vunpack.c.l.b16 %v284
      %v325 = vunpack.c.l.b16 %v285
      %v326 = vunpack.c.l.b16 %v286
      %v327 = vunpack.c.l.b16 %v287
      %v328 = vunpack.c.l.b16 %v288
      %v329 = vunpack.c.l.b16 %v289
      %v330 = vunpack.c.l.b16 %v290
      %v331 = vunpack.c.l.b16 %v291
      %v332 = vunpack.c.l.b16 %v292
      %v333 = vunpack.c.l.b16 %v293
      %v334 = vunpack.c.l.b16 %v294
      %v335 = vunpack.c.l.b16 %v295
      %v336 = vunpack.c.l.b16 %v296
      %v337 = vunpack.c.l.b16 %v297
      %v338 = vunpack.c.l.b16 %v298
      %v339 = vpack.c.b16 %v324, %v323
      %v340 = vpack.c.b16 %v326, %v325
      %v341 = vpack.c.b16 %v328, %v327
      %v342 = vpack.c.b16 %v330, %v329
      %v343 = vpack.c.b16 %v332, %v331
      %v344 = vpack.c.b16 %v334, %v333
      %v345 = vpack.c.b16 %v336, %v335
      %v346 = vpack.c.b16 %v338, %v337
      %v351 = vunpack.c.l.b16 %v299
      %v352 = vunpack.c.l.b16 %v300
      %v353 = vunpack.c.l.b16 %v301
      %v354 = vunpack.c.l.b16 %v302
      %v355 = vpack.c.b16 %v352, %v351
      %v356 = vpack.c.b16 %v354, %v353
      %vm359 = vcmask 261120
      %v361 = vsel %vm359, %v339, 0
      %v364 = vsel %vm359, %v340, 0
      %v367 = vsel %vm359, %v341, 0
      %v370 = vsel %vm359, %v342, 0
      %v373 = vsel %vm359, %v343, 0
      %v376 = vsel %vm359, %v344, 0
      %v379 = vsel %vm359, %v345, 0
      %v382 = vsel %vm359, %v346, 0
      %384 = vmatpush.bf16.msra.mxu0 0
      %385 = vmatpush.bf16.msra.mxu0 0
      %386 = vmatpush.bf16.msra.mxu0 0
      %387 = vmatpush.bf16.msra.mxu0 0
      %388 = vmatpush.bf16.msra.mxu0 0
      %389 = vmatpush.bf16.msra.mxu0 0
      %390 = vmatpush.bf16.msra.mxu0 %v356
      %391 = vmatpush.bf16.msra.mxu0 %v355
      %392 = vmatmul.bf16.gmra.mxu0 %v361
      %v393 = vpop.f32.mrf.mxu0
      %v394 = vadd.f32 %v305, %v393
      %v395 = vpop.f32.mrf.mxu0
      %v396 = vadd.f32 %v305, %v395
      %397 = vmatmul.bf16.gmra.mxu0 %v364
      %v398 = vpop.f32.mrf.mxu0
      %v399 = vadd.f32 %v305, %v398
      %v400 = vpop.f32.mrf.mxu0
      %v401 = vadd.f32 %v305, %v400
      %402 = vmatmul.bf16.gmra.mxu0 %v367
      %v403 = vpop.f32.mrf.mxu0
      %v404 = vadd.f32 %v305, %v403
      %v405 = vpop.f32.mrf.mxu0
      %v406 = vadd.f32 %v305, %v405
      %407 = vmatmul.bf16.gmra.mxu0 %v370
      %v408 = vpop.f32.mrf.mxu0
      %v409 = vadd.f32 %v305, %v408
      %v410 = vpop.f32.mrf.mxu0
      %v411 = vadd.f32 %v305, %v410
      %412 = vmatmul.bf16.gmra.mxu0 %v373
      %v413 = vpop.f32.mrf.mxu0
      %v414 = vadd.f32 %v305, %v413
      %v415 = vpop.f32.mrf.mxu0
      %v416 = vadd.f32 %v305, %v415
      %417 = vmatmul.bf16.gmra.mxu0 %v376
      %v418 = vpop.f32.mrf.mxu0
      %v419 = vadd.f32 %v305, %v418
      %v420 = vpop.f32.mrf.mxu0
      %v421 = vadd.f32 %v305, %v420
      %422 = vmatmul.bf16.gmra.mxu0 %v379
      %v423 = vpop.f32.mrf.mxu0
      %v424 = vadd.f32 %v305, %v423
      %v425 = vpop.f32.mrf.mxu0
      %v426 = vadd.f32 %v305, %v425
      %427 = vmatmul.bf16.gmra.mxu0 %v382
      %v428 = vpop.f32.mrf.mxu0
      %v429 = vadd.f32 %v305, %v428
      %v430 = vpop.f32.mrf.mxu0
      %v431 = vadd.f32 %v305, %v430
      %432 = vdwg.mxu0
      %v433 = vmax.f32 %v394, 0.0
      %v434 = vmax.f32 %v396, 0.0
      %v435 = vmax.f32 %v399, 0.0
      %v436 = vmax.f32 %v401, 0.0
      %v437 = vmax.f32 %v404, 0.0
      %v438 = vmax.f32 %v406, 0.0
      %v439 = vmax.f32 %v409, 0.0
      %v440 = vmax.f32 %v411, 0.0
      %v441 = vmax.f32 %v414, 0.0
      %v442 = vmax.f32 %v416, 0.0
      %v443 = vmax.f32 %v419, 0.0
      %v444 = vmax.f32 %v421, 0.0
      %v445 = vmax.f32 %v424, 0.0
      %v446 = vmax.f32 %v426, 0.0
      %v447 = vmax.f32 %v429, 0.0
      %v448 = vmax.f32 %v431, 0.0
      %v449 = vpack.c.bf16 %v434, %v433
      %v450 = vpack.c.bf16 %v436, %v435
      %v451 = vpack.c.bf16 %v438, %v437
      %v452 = vpack.c.bf16 %v440, %v439
      %v453 = vpack.c.bf16 %v442, %v441
      %v454 = vpack.c.bf16 %v444, %v443
      %v455 = vpack.c.bf16 %v446, %v445
      %v456 = vpack.c.bf16 %v448, %v447
      %v457 = vld [vmem:[%s3] sm:$0xf]
      %v458 = vld [vmem:[%s3 + $0x4] sm:$0xf]
      %v459 = vld [vmem:[%s3 + $0x8] sm:$0xf]
      %v460 = vld [vmem:[%s3 + $0xc] sm:$0xf]
      %v461 = vld [vmem:[%s3 + $0x10] sm:$0xf]
      %v462 = vld [vmem:[%s3 + $0x14] sm:$0xf]
      %v463 = vld [vmem:[%s3 + $0x18] sm:$0xf]
      %v464 = vld [vmem:[%s3 + $0x1c] sm:$0xf]
      %v465 = vld [vmem:[%s3 + $0x20] sm:$0xf]
      %v466 = vld [vmem:[%s3 + $0x24] sm:$0xf]
      %v467 = vld [vmem:[%s3 + $0x28] sm:$0xf]
      %v468 = vld [vmem:[%s3 + $0x2c] sm:$0xf]
      %v469 = vld [vmem:[%s3 + $0x30] sm:$0xf]
      %v470 = vld [vmem:[%s3 + $0x34] sm:$0xf]
      %v471 = vld [vmem:[%s3 + $0x38] sm:$0xf]
      %v472 = vld [vmem:[%s3 + $0x3c] sm:$0xf]
      %v473 = vld [vmem:[%s4] sm:$0x1]
      %v475 = vperm.slane %v473, 0
      %v493 = vunpack.c.l.b16 %v457
      %v494 = vunpack.c.l.b16 %v458
      %v495 = vunpack.c.l.b16 %v459
      %v496 = vunpack.c.l.b16 %v460
      %v497 = vunpack.c.l.b16 %v461
      %v498 = vunpack.c.l.b16 %v462
      %v499 = vunpack.c.l.b16 %v463
      %v500 = vunpack.c.l.b16 %v464
      %v501 = vunpack.c.l.b16 %v465
      %v502 = vunpack.c.l.b16 %v466
      %v503 = vunpack.c.l.b16 %v467
      %v504 = vunpack.c.l.b16 %v468
      %v505 = vunpack.c.l.b16 %v469
      %v506 = vunpack.c.l.b16 %v470
      %v507 = vunpack.c.l.b16 %v471
      %v508 = vunpack.c.l.b16 %v472
      %v509 = vpack.c.b16 %v494, %v493
      %v510 = vpack.c.b16 %v496, %v495
      %v511 = vpack.c.b16 %v498, %v497
      %v512 = vpack.c.b16 %v500, %v499
      %v513 = vpack.c.b16 %v502, %v501
      %v514 = vpack.c.b16 %v504, %v503
      %v515 = vpack.c.b16 %v506, %v505
      %v516 = vpack.c.b16 %v508, %v507
      %525 = vmatpush.bf16.msra.mxu0 %v516
      %526 = vmatpush.bf16.msra.mxu0 %v515
      %527 = vmatpush.bf16.msra.mxu0 %v514
      %528 = vmatpush.bf16.msra.mxu0 %v513
      %529 = vmatpush.bf16.msra.mxu0 %v512
      %530 = vmatpush.bf16.msra.mxu0 %v511
      %531 = vmatpush.bf16.msra.mxu0 %v510
      %532 = vmatpush.bf16.msra.mxu0 %v509
      %533 = vmatmul.bf16.gmra.mxu0 %v449
      %v534 = vpop.f32.mrf.mxu0
      %v535 = vadd.f32 %v475, %v534
      %v536 = vpop.f32.mrf.mxu0
      %v537 = vadd.f32 %v475, %v536
      %538 = vmatmul.bf16.gmra.mxu0 %v450
      %v539 = vpop.f32.mrf.mxu0
      %v540 = vadd.f32 %v475, %v539
      %v541 = vpop.f32.mrf.mxu0
      %v542 = vadd.f32 %v475, %v541
      %543 = vmatmul.bf16.gmra.mxu0 %v451
      %v544 = vpop.f32.mrf.mxu0
      %v545 = vadd.f32 %v475, %v544
      %v546 = vpop.f32.mrf.mxu0
      %v547 = vadd.f32 %v475, %v546
      %548 = vmatmul.bf16.gmra.mxu0 %v452
      %v549 = vpop.f32.mrf.mxu0
      %v550 = vadd.f32 %v475, %v549
      %v551 = vpop.f32.mrf.mxu0
      %v552 = vadd.f32 %v475, %v551
      %553 = vmatmul.bf16.gmra.mxu0 %v453
      %v554 = vpop.f32.mrf.mxu0
      %v555 = vadd.f32 %v475, %v554
      %v556 = vpop.f32.mrf.mxu0
      %v557 = vadd.f32 %v475, %v556
      %558 = vmatmul.bf16.gmra.mxu0 %v454
      %v559 = vpop.f32.mrf.mxu0
      %v560 = vadd.f32 %v475, %v559
      %v561 = vpop.f32.mrf.mxu0
      %v562 = vadd.f32 %v475, %v561
      %563 = vmatmul.bf16.gmra.mxu0 %v455
      %v564 = vpop.f32.mrf.mxu0
      %v565 = vadd.f32 %v475, %v564
      %v566 = vpop.f32.mrf.mxu0
      %v567 = vadd.f32 %v475, %v566
      %568 = vmatmul.bf16.gmra.mxu0 %v456
      %v569 = vpop.f32.mrf.mxu0
      %v570 = vadd.f32 %v475, %v569
      %v571 = vpop.f32.mrf.mxu0
      %v572 = vadd.f32 %v475, %v571
      %573 = vdwg.mxu0
      %v574 = vmax.f32 %v535, 0.0
      %v575 = vmax.f32 %v537, 0.0
      %v576 = vmax.f32 %v540, 0.0
      %v577 = vmax.f32 %v542, 0.0
      %v578 = vmax.f32 %v545, 0.0
      %v579 = vmax.f32 %v547, 0.0
      %v580 = vmax.f32 %v550, 0.0
      %v581 = vmax.f32 %v552, 0.0
      %v582 = vmax.f32 %v555, 0.0
      %v583 = vmax.f32 %v557, 0.0
      %v584 = vmax.f32 %v560, 0.0
      %v585 = vmax.f32 %v562, 0.0
      %v586 = vmax.f32 %v565, 0.0
      %v587 = vmax.f32 %v567, 0.0
      %v588 = vmax.f32 %v570, 0.0
      %v589 = vmax.f32 %v572, 0.0
      %v590 = vpack.c.bf16 %v575, %v574
      %v591 = vpack.c.bf16 %v577, %v576
      %v592 = vpack.c.bf16 %v579, %v578
      %v593 = vpack.c.bf16 %v581, %v580
      %v594 = vpack.c.bf16 %v583, %v582
      %v595 = vpack.c.bf16 %v585, %v584
      %v596 = vpack.c.bf16 %v587, %v586
      %v597 = vpack.c.bf16 %v589, %v588
      %v598 = vld [vmem:[%s5] sm:$0xf]
      %v599 = vld [vmem:[%s5 + $0x4] sm:$0xf]
      %v600 = vld [vmem:[%s5 + $0x8] sm:$0xf]
      %v601 = vld [vmem:[%s5 + $0xc] sm:$0xf]
      %v602 = vld [vmem:[%s5 + $0x10] sm:$0xf]
      %v603 = vld [vmem:[%s5 + $0x14] sm:$0xf]
      %v604 = vld [vmem:[%s5 + $0x18] sm:$0xf]
      %v605 = vld [vmem:[%s5 + $0x1c] sm:$0xf]
      %v606 = vld [vmem:[%s5 + $0x20] sm:$0xf]
      %v607 = vld [vmem:[%s5 + $0x24] sm:$0xf]
      %v608 = vld [vmem:[%s5 + $0x28] sm:$0xf]
      %v609 = vld [vmem:[%s5 + $0x2c] sm:$0xf]
      %v610 = vld [vmem:[%s5 + $0x30] sm:$0xf]
      %v611 = vld [vmem:[%s5 + $0x34] sm:$0xf]
      %v612 = vld [vmem:[%s5 + $0x38] sm:$0xf]
      %v613 = vld [vmem:[%s5 + $0x3c] sm:$0xf]
      %v614 = vld [vmem:[%s6] sm:$0x1]
      %v616 = vperm.slane %v614, 0
      %v634 = vunpack.c.l.b16 %v598
      %v635 = vunpack.c.l.b16 %v599
      %v636 = vunpack.c.l.b16 %v600
      %v637 = vunpack.c.l.b16 %v601
      %v638 = vunpack.c.l.b16 %v602
      %v639 = vunpack.c.l.b16 %v603
      %v640 = vunpack.c.l.b16 %v604
      %v641 = vunpack.c.l.b16 %v605
      %v642 = vunpack.c.l.b16 %v606
      %v643 = vunpack.c.l.b16 %v607
      %v644 = vunpack.c.l.b16 %v608
      %v645 = vunpack.c.l.b16 %v609
      %v646 = vunpack.c.l.b16 %v610
      %v647 = vunpack.c.l.b16 %v611
      %v648 = vunpack.c.l.b16 %v612
      %v649 = vunpack.c.l.b16 %v613
      %v650 = vpack.c.b16 %v635, %v634
      %v651 = vpack.c.b16 %v637, %v636
      %v652 = vpack.c.b16 %v639, %v638
      %v653 = vpack.c.b16 %v641, %v640
      %v654 = vpack.c.b16 %v643, %v642
      %v655 = vpack.c.b16 %v645, %v644
      %v656 = vpack.c.b16 %v647, %v646
      %v657 = vpack.c.b16 %v649, %v648
      %666 = vmatpush.bf16.msra.mxu0 %v657
      %667 = vmatpush.bf16.msra.mxu0 %v656
      %668 = vmatpush.bf16.msra.mxu0 %v655
      %669 = vmatpush.bf16.msra.mxu0 %v654
      %670 = vmatpush.bf16.msra.mxu0 %v653
      %671 = vmatpush.bf16.msra.mxu0 %v652
      %672 = vmatpush.bf16.msra.mxu0 %v651
      %673 = vmatpush.bf16.msra.mxu0 %v650
      %674 = vmatmul.bf16.gmra.mxu0 %v590
      %v675 = vpop.f32.mrf.mxu0
      %v676 = vadd.f32 %v616, %v675
      %v677 = vpop.f32.mrf.mxu0
      %v678 = vadd.f32 %v616, %v677
      %679 = vmatmul.bf16.gmra.mxu0 %v591
      %v680 = vpop.f32.mrf.mxu0
      %v681 = vadd.f32 %v616, %v680
      %v682 = vpop.f32.mrf.mxu0
      %v683 = vadd.f32 %v616, %v682
      %684 = vmatmul.bf16.gmra.mxu0 %v592
      %v685 = vpop.f32.mrf.mxu0
      %v686 = vadd.f32 %v616, %v685
      %v687 = vpop.f32.mrf.mxu0
      %v688 = vadd.f32 %v616, %v687
      %689 = vmatmul.bf16.gmra.mxu0 %v593
      %v690 = vpop.f32.mrf.mxu0
      %v691 = vadd.f32 %v616, %v690
      %v692 = vpop.f32.mrf.mxu0
      %v693 = vadd.f32 %v616, %v692
      %694 = vmatmul.bf16.gmra.mxu0 %v594
      %v695 = vpop.f32.mrf.mxu0
      %v696 = vadd.f32 %v616, %v695
      %v697 = vpop.f32.mrf.mxu0
      %v698 = vadd.f32 %v616, %v697
      %699 = vmatmul.bf16.gmra.mxu0 %v595
      %v700 = vpop.f32.mrf.mxu0
      %v701 = vadd.f32 %v616, %v700
      %v702 = vpop.f32.mrf.mxu0
      %v703 = vadd.f32 %v616, %v702
      %704 = vmatmul.bf16.gmra.mxu0 %v596
      %v705 = vpop.f32.mrf.mxu0
      %v706 = vadd.f32 %v616, %v705
      %v707 = vpop.f32.mrf.mxu0
      %v708 = vadd.f32 %v616, %v707
      %709 = vmatmul.bf16.gmra.mxu0 %v597
      %v710 = vpop.f32.mrf.mxu0
      %v711 = vadd.f32 %v616, %v710
      %v712 = vpop.f32.mrf.mxu0
      %v713 = vadd.f32 %v616, %v712
      %714 = vdwg.mxu0
      %715 = vst [vmem:[%s280] sm:$0xff] %v676
      %716 = vst [vmem:[%s280 + $0x8] sm:$0xff] %v678
      %717 = vst [vmem:[%s280 + $0x10] sm:$0xff] %v681
      %718 = vst [vmem:[%s280 + $0x18] sm:$0xff] %v683
      %719 = vst [vmem:[%s280 + $0x20] sm:$0xff] %v686
      %720 = vst [vmem:[%s280 + $0x28] sm:$0xff] %v688
      %721 = vst [vmem:[%s280 + $0x30] sm:$0xff] %v691
      %722 = vst [vmem:[%s280 + $0x38] sm:$0xff] %v693
      %723 = vst [vmem:[%s280 + $0x40] sm:$0xff] %v696
      %724 = vst [vmem:[%s280 + $0x48] sm:$0xff] %v698
      %725 = vst [vmem:[%s280 + $0x50] sm:$0xff] %v701
      %726 = vst [vmem:[%s280 + $0x58] sm:$0xff] %v703
      %727 = vst [vmem:[%s280 + $0x60] sm:$0xff] %v706
      %728 = vst [vmem:[%s280 + $0x68] sm:$0xff] %v708
      %729 = vst [vmem:[%s280 + $0x70] sm:$0xff] %v711
      %730 = vst [vmem:[%s280 + $0x78] sm:$0xff] %v713
      %s731 = smul.u32 16, %s18
      %p732 = scmp.lt.s32.totalorder %s731, 31
      %s733 = scalar_select %p732, %s731, 31
      %s734 = smul.addr %s733, 8
      %s735 = scalar_lea.vmem %s7, %s734
      // Predicated region
      $region49: #{tab_forward.1} parent=47 // pred_check
        %p736 = pneg %p188
      $region50: #{tab_forward.1} parent=47 // pred_check_branch
        %738 = sbr.rel (%p736) target = $region52
      $region51: #{tab_forward.1} parent=47 // pred_region
        %s739 = smul.u32 16, %s18
      $region52: #{tab_forward.1} parent=47 // pred_fallthru
        _
    $region48: #{tab_forward.1} parent=5 // pred_fallthru
      _
    %p740 = scmp.le.s32.totalorder 2, %s13
    // Predicated region
    $region53: #{tab_forward.1} parent=5 // pred_check
      %p741 = pneg %p740
    $region54: #{tab_forward.1} parent=5 // pred_check_branch
      %743 = sbr.rel (%p741) target = $region56
    $region55: #{tab_forward.1} parent=5 // pred_region
      %s744 = ssub.s32 %s13, 2
      // Predicated region
      $region57: #{tab_forward.1} parent=55 // pred_check
        %p745 = pneg %p194
      $region58: #{tab_forward.1} parent=55 // pred_check_branch
        %747 = sbr.rel (%p745) target = $region60
      $region59: #{tab_forward.1} parent=55 // pred_region
        %s748 = smul.u32 16, %s19
        %p749 = scmp.lt.s32.totalorder %s748, 31
        %s750 = scalar_select %p749, %s748, 31
        %s751 = smul.addr %s750, 8
        %s752 = scalar_lea.vmem %s7, %s751
      $region60: #{tab_forward.1} parent=55 // pred_fallthru
        _
    $region56: #{tab_forward.1} parent=5 // pred_fallthru
      _
  $region6: #{tab_forward.1} parent=0 // loop_footer
    %s17 = sadd.s32 1, %s13
  $region7: #{tab_forward.1} parent=0 // loop_footer_branch
    %12 = sbr.rel target = $region3
  $region8: #{tab_forward.1} parent=0 // loop_exit
    _

</llo_original>
